<compile_context>
chip_gen: v5e
topology: v5e:2x2
jax: 0.10.0
libtpu: 0.0.40
codegen_flags: <defaults>
</compile_context>

<pallas_src>
import functools

import jax
import jax.numpy as jnp
from jax.experimental import pallas as pl
from jax.experimental.pallas import tpu as pltpu


def _rmsnorm_kernel(x_ref, w_ref, o_ref, *, eps: float):
    # x_ref: (block_rows, dim), w_ref: (1, dim), o_ref: (block_rows, dim)
    x = x_ref[...].astype(jnp.float32)              # x.float()
    ms = jnp.mean(x * x, axis=-1, keepdims=True)    # mean over last dim (per row)
    inv = jax.lax.rsqrt(ms + eps)                   # rsqrt on the EUP
    normed = (x * inv).astype(x_ref.dtype)          # .type_as(x)
    # output * weight : weight kept in its own dtype, result promotes like PyTorch.
    o_ref[...] = (normed * w_ref[...]).astype(o_ref.dtype)


def _vmem_capacity_bytes() -> int:
    try:
        return int(pltpu.get_tpu_info().vmem_capacity_bytes)
    except Exception:
        return 64 * 1024 * 1024  # conservative (v7x physical VMEM)


def _pick_block_rows(rows: int, dim: int, in_bytes: int, out_bytes: int) -> int:
    """Largest row tile that fits comfortably in VMEM, aligned & megacore-friendly."""
    # Per-row VMEM cost: 2x double-buffered input tile, 2x output tile, fp32 temp.
    bytes_per_row = dim * (2 * in_bytes + 2 * out_bytes + 4)
    budget = _vmem_capacity_bytes() // 2  # leave ~50% headroom on any generation
    br = max(32, budget // max(bytes_per_row, 1))
    br = min(br, 1024)
    br = (br // 32) * 32  # multiple of 32: sublane-packed for fp32/bf16/int8 alike
    # Don't make the tile (much) bigger than the whole problem.
    rows_rounded = ((rows + 31) // 32) * 32
    br = min(br, max(32, rows_rounded))
    # Keep several grid blocks when the problem is large enough (v7x has 2 TCs).
    while br > 256 and pl.cdiv(rows, br) < 4:
        br = max(256, ((br // 2) // 32) * 32)
    return max(32, br)


def rmsnorm(x: jax.Array, weight: jax.Array, eps: float = 1e-6,
            block_rows: int | None = None) -> jax.Array:
    """RMSNorm over the last axis. x: (..., dim); weight: (dim,)."""
    orig_shape = x.shape
    dim = orig_shape[-1]
    rows = 1
    for s in orig_shape[:-1]:
        rows *= s

    x2d = x.reshape(rows, dim)
    w2d = weight.reshape(1, dim)
    out_dtype = jnp.promote_types(x.dtype, weight.dtype)

    in_bytes = jnp.dtype(x.dtype).itemsize
    out_bytes = jnp.dtype(out_dtype).itemsize
    if block_rows is None:
        block_rows = _pick_block_rows(rows, dim, in_bytes, out_bytes)

    grid = (pl.cdiv(rows, block_rows),)  # partial last block is masked by Pallas

    # VMEM budget: double-buffered in/out tiles + fp32 temp + (padded) weight row.
    tile_bytes = block_rows * dim * (2 * in_bytes + 2 * out_bytes + 4)
    w_bytes = 8 * max(dim, 128) * jnp.dtype(weight.dtype).itemsize
    vmem_cap = _vmem_capacity_bytes()
    vmem_limit = int(min(vmem_cap * 0.9,
                         max(32 * 1024 * 1024, int(tile_bytes * 1.25) + w_bytes)))

    # NOTE: for best store bandwidth, dim should be a multiple of 128 (lane-dense);
    # smaller dims still run correctly (block last dim == full array dim) but use
    # masked partial stores.

    out2d = pl.pallas_call(
        functools.partial(_rmsnorm_kernel, eps=eps),
        out_shape=jax.ShapeDtypeStruct((rows, dim), out_dtype),
        grid_spec=pltpu.PrefetchScalarGridSpec(
            num_scalar_prefetch=0,
            grid=grid,
            in_specs=[
                pl.BlockSpec((block_rows, dim), lambda i: (i, 0)),
                pl.BlockSpec((1, dim), lambda i: (0, 0)),
            ],
            out_specs=pl.BlockSpec((block_rows, dim), lambda i: (i, 0)),
        ),
        compiler_params=pltpu.CompilerParams(
            dimension_semantics=("parallel",),
            vmem_limit_bytes=vmem_limit,
        ),
    )(x2d, w2d)

    return out2d.reshape(orig_shape[:-1] + (dim,))


if __name__ == "__main__":
    key = jax.random.PRNGKey(0)
    batch, seq, dim = 2, 8, 32
    x = jax.random.normal(key, (batch, seq, dim), dtype=jnp.float32)

    # Deterministic parameter init, as in RMSNorm.__init__: weight = ones(dim)
    weight = jnp.ones((dim,), dtype=jnp.float32)
    eps = 1e-6

    out = rmsnorm(x, weight, eps=eps)
    jax.block_until_ready(out)

    # Pure-JAX reference (same math as the PyTorch module).
    xf = x.astype(jnp.float32)
    ref = (xf * jax.lax.rsqrt(jnp.mean(xf * xf, axis=-1, keepdims=True) + eps)
           ).astype(x.dtype) * weight
    assert out.shape == x.shape and out.dtype == ref.dtype
    assert jnp.allclose(out, ref, atol=1e-5, rtol=1e-5)

    # Also exercise a non-divisible row count to verify partial-block masking.
    x2 = jax.random.normal(jax.random.PRNGKey(1), (3, 7, dim), dtype=jnp.float32)
    out2 = rmsnorm(x2, weight, eps=eps)
    jax.block_until_ready(out2)
    xf2 = x2.astype(jnp.float32)
    ref2 = (xf2 * jax.lax.rsqrt(jnp.mean(xf2 * xf2, axis=-1, keepdims=True) + eps)
            ).astype(x2.dtype) * weight
    assert jnp.allclose(out2, ref2, atol=1e-5, rtol=1e-5)

    print("KERNEL_OK")
</pallas_src>

<mosaic_0001>
module attributes {stable_mosaic.version = 11 : i64} {
  func.func @_rmsnorm_kernel(%arg0: i32, %arg1: memref<32x32xf32, #tpu.memory_space<vmem>>, %arg2: memref<1x32xf32, #tpu.memory_space<vmem>>, %arg3: memref<32x32xf32, #tpu.memory_space<vmem>>) attributes {dimension_semantics = [#tpu.dimension_semantics<parallel>], iteration_bounds = array<i64: 1>, scalar_prefetch = 0 : i64, scratch_operands = 0 : i64, tpu.core_type = #tpu.core_type<tc>, window_params = [{transform_indices = @transform_0, window_bounds = array<i64: 32, 32>}, {pipeline_mode = #tpu.pipeline_mode<synchronous>, transform_indices = @transform_1, window_bounds = array<i64: 1, 32>}, {transform_indices = @transform_2, window_bounds = array<i64: 32, 32>}]} {
    %c0 = arith.constant 0 : index
    %c0_0 = arith.constant 0 : index
    %0 = vector.load %arg1[%c0, %c0_0] : memref<32x32xf32, #tpu.memory_space<vmem>>, vector<32x32xf32>
    %1 = arith.mulf %0, %0 : vector<32x32xf32>
    %cst = arith.constant dense<0.000000e+00> : vector<32xf32>
    %2 = vector.multi_reduction <add>, %1, %cst [1] : vector<32x32xf32> to vector<32xf32>
    %3 = vector.shape_cast %2 : vector<32xf32> to vector<32x1xf32>
    %cst_1 = arith.constant 3.200000e+01 : f32
    %4 = vector.broadcast %cst_1 : f32 to vector<32x1xf32>
    %5 = arith.divf %3, %4 : vector<32x1xf32>
    %cst_2 = arith.constant 9.99999997E-7 : f32
    %6 = vector.broadcast %cst_2 : f32 to vector<32x1xf32>
    %7 = arith.addf %5, %6 : vector<32x1xf32>
    %8 = math.rsqrt %7 : vector<32x1xf32>
    %9 = vector.broadcast %8 : vector<32x1xf32> to vector<32x32xf32>
    %10 = arith.mulf %0, %9 : vector<32x32xf32>
    %c0_3 = arith.constant 0 : index
    %c0_4 = arith.constant 0 : index
    %11 = vector.load %arg2[%c0_3, %c0_4] : memref<1x32xf32, #tpu.memory_space<vmem>>, vector<1x32xf32>
    %12 = vector.broadcast %11 : vector<1x32xf32> to vector<32x32xf32>
    %13 = arith.mulf %10, %12 : vector<32x32xf32>
    %c0_5 = arith.constant 0 : index
    %c0_6 = arith.constant 0 : index
    %14 = vector.load %arg3[%c0_5, %c0_6] : memref<32x32xf32, #tpu.memory_space<vmem>>, vector<32x32xf32>
    tpu.vector_store %arg3[%c0_5, %c0_6], %13 {strides = array<i32>} : memref<32x32xf32, #tpu.memory_space<vmem>>, vector<32x32xf32>,
    return
  }
  func.func @transform_0(%arg0: i32) -> (i32, i32) {
    %c0_i32 = arith.constant 0 : i32
    %c0_i32_0 = arith.constant 0 : i32
    return %arg0, %c0_i32 : i32, i32
  }
  func.func @transform_1(%arg0: i32) -> (i32, i32) {
    %c0_i32 = arith.constant 0 : i32
    %c0_i32_0 = arith.constant 0 : i32
    %c0_i32_1 = arith.constant 0 : i32
    return %c0_i32, %c0_i32_0 : i32, i32
  }
  func.func @transform_2(%arg0: i32) -> (i32, i32) {
    %c0_i32 = arith.constant 0 : i32
    %c0_i32_0 = arith.constant 0 : i32
    return %arg0, %c0_i32 : i32, i32
  }
}

</mosaic_0001>

<llo_original>
// kernel: tpu_custom_call.1
$region0: #{tpu_custom_call.1}
  #allocation0 [shape = 'u32[]', space=smem, size = 0x4, offset = 0x4, fixed_abs, tag = 'smem constant byte address 0x4 - core index']
  #allocation1 [shape = 'u32[72,128]{1,0:T(1,128)}', space=vmem, size = 0x9000, scoped, tag = 'internal scratch']
  %s0 = inlined_call_operand.hbm [shape: f32[16,32], index: 0, kind: input, shape index: {}]
  %s1 = inlined_call_operand.hbm [shape: f32[1,32], index: 1, kind: input, shape index: {}]
  %s2 = inlined_call_operand.hbm [shape: f32[16,32], index: 2, kind: output, shape index: {}]
  %s3 = sld [smem:[#allocation0]]
  $region26: #{tpu_custom_call.1} parent=0
    _
  %s5 = ssub.s32 1, %s3
  %s6 = scalar_select 0, %s5, %s3
  $region1: #{tpu_custom_call.1} parent=0
    #allocation2 [shape = 'u8[16384]{0}', space=vmem, size = 0x4000, scoped, tag = 'input window, operand 0, single buffered']
    #allocation3 [shape = 's32[1]{0}', space=sflag, size = 0x4, scoped, tag = 'scoped memory for tpu_custom_call.1']
    #allocation4 [shape = 's32[1]{0}', space=sflag, size = 0x4, scoped, tag = 'scoped memory for tpu_custom_call.1']
    #allocation5 [shape = 'u8[512]{0}', space=vmem, size = 0x400, scoped, tag = 'input window, operand 1, single buffered']
    #allocation6 [shape = 's32[1]{0}', space=sflag, size = 0x4, scoped, tag = 'scoped memory for tpu_custom_call.1']
    #allocation7 [shape = 'u8[16384]{0}', space=vmem, size = 0x4000, scoped, tag = 'output window, operand 0, single buffered']
    %7 = vsyncpa [#allocation3], 0
    %8 = vsyncpa [#allocation6], 0
    %9 = vsyncpa [#allocation4], 0
    // Predicated region
    $region2: #{tpu_custom_call.1} parent=1 // pred_check
      _
    $region3: #{tpu_custom_call.1} parent=1 // pred_check_branch
      %11 = sbr.rel (0) target = $region5
    $region4: #{tpu_custom_call.1} parent=1 // pred_region
      %13 = vsyncadd [#allocation3], 256
      %s14 = sshll.u32 %s0, 4
      %s15 = int_to_ptr.hbm [resolvable:$true] %s14
      %s16 = sshll.u32 [#allocation2], 4
      %s17 = int_to_ptr.vmem [resolvable:$true] %s16
      %22 = dma.hbm_to_vmem [thread:$0]  %s15, 256, %s17, [#allocation3], 128, 128, 8
    $region5: #{tpu_custom_call.1} parent=1 // pred_fallthru
      _
    // Predicated region
    $region6: #{tpu_custom_call.1} parent=1 // pred_check
      _
    $region7: #{tpu_custom_call.1} parent=1 // pred_check_branch
      %24 = sbr.rel (0) target = $region9
    $region8: #{tpu_custom_call.1} parent=1 // pred_region
      %26 = vsyncadd [#allocation6], 0
      %s28 = sshll.u32 %s1, 4
      %s29 = int_to_ptr.hbm [resolvable:$true] %s28
      %s30 = sshll.u32 [#allocation5], 4
      %s31 = int_to_ptr.vmem [resolvable:$true] %s30
      %33 = dma.hbm_to_vmem [thread:$0]  %s29, 16, %s31, [#allocation6]
    $region9: #{tpu_custom_call.1} parent=1 // pred_fallthru
      _
    // Predicated region
    $region10: #{tpu_custom_call.1} parent=1 // pred_check
      _
    $region11: #{tpu_custom_call.1} parent=1 // pred_check_branch
      %35 = sbr.rel (0) target = $region13
    $region12: #{tpu_custom_call.1} parent=1 // pred_region
      %37 = dma.done [#allocation3], 512
    $region13: #{tpu_custom_call.1} parent=1 // pred_fallthru
      _
    // Predicated region
    $region14: #{tpu_custom_call.1} parent=1 // pred_check
      _
    $region15: #{tpu_custom_call.1} parent=1 // pred_check_branch
      %39 = sbr.rel (0) target = $region17
    $region16: #{tpu_custom_call.1} parent=1 // pred_region
      %41 = dma.done [#allocation6], 16
    $region17: #{tpu_custom_call.1} parent=1 // pred_fallthru
      _
    %v42 = vld [vmem:[#allocation2] sm:$0xff]
    %v43 = vld [vmem:[#allocation2 + $0x8] sm:$0xff]
    %v44 = vld [vmem:[#allocation2 + $0x10] sm:$0xff]
    %v45 = vld [vmem:[#allocation2 + $0x18] sm:$0xff]
    %v46 = vmul.f32 %v42, %v42
    %v47 = vmul.f32 %v43, %v43
    %v48 = vmul.f32 %v44, %v44
    %v49 = vmul.f32 %v45, %v45
    %vm50 = vcmask 261120
    %v51 = vsel %vm50, %v46, 0.0
    %52 = vadd.xlane.f32.xlu0 %v51
    %v53 = vpop.xlane.xlu0 %52
    %v54 = vsel %vm50, %v47, 0.0
    %55 = vadd.xlane.f32.xlu0 %v54
    %v56 = vpop.xlane.xlu0 %55
    %v57 = vsel %vm50, %v48, 0.0
    %58 = vadd.xlane.f32.xlu0 %v57
    %v59 = vpop.xlane.xlu0 %58
    %v60 = vsel %vm50, %v49, 0.0
    %61 = vadd.xlane.f32.xlu0 %v60
    %v62 = vpop.xlane.xlu0 %61
    %v63 = vrcp.pop 32.0
    %v64 = vmul.f32 32.0, %v63
    %v65 = vsub.f32 1.0, %v64
    %v66 = vmul.f32 %v63, %v65
    %v67 = vadd.f32 %v63, %v66
    %vm68 = vweird.f32 %v63
    %v69 = vsel %vm68, %v63, %v67
    %v70 = vmul.f32 %v53, %v69
    %v71 = vmul.f32 %v56, %v69
    %v72 = vmul.f32 %v59, %v69
    %v73 = vmul.f32 %v62, %v69
    %v74 = vadd.f32 %v70, 1e-06
    %v75 = vadd.f32 %v71, 1e-06
    %v76 = vadd.f32 %v72, 1e-06
    %v77 = vadd.f32 %v73, 1e-06
    %v78 = vrsqrt.pop %v74
    %v79 = vmul.f32 %v78, %v74
    %v80 = vmul.f32 %v79, %v78
    %v81 = vmul.f32 0.5, %v80
    %v82 = vsub.f32 1.5, %v81
    %v83 = vmul.f32 %v78, %v82
    %vm84 = vweird.f32 %v74
    %vm85 = vweird.f32 %v78
    %vm86 = vmor %vm84, %vm85
    %v87 = vsel %vm86, %v78, %v83
    %v88 = vrsqrt.pop %v75
    %v89 = vmul.f32 %v88, %v75
    %v90 = vmul.f32 %v89, %v88
    %v91 = vmul.f32 0.5, %v90
    %v92 = vsub.f32 1.5, %v91
    %v93 = vmul.f32 %v88, %v92
    %vm94 = vweird.f32 %v75
    %vm95 = vweird.f32 %v88
    %vm96 = vmor %vm94, %vm95
    %v97 = vsel %vm96, %v88, %v93
    %v98 = vrsqrt.pop %v76
    %v99 = vmul.f32 %v98, %v76
    %v100 = vmul.f32 %v99, %v98
    %v101 = vmul.f32 0.5, %v100
    %v102 = vsub.f32 1.5, %v101
    %v103 = vmul.f32 %v98, %v102
    %vm104 = vweird.f32 %v76
    %vm105 = vweird.f32 %v98
    %vm106 = vmor %vm104, %vm105
    %v107 = vsel %vm106, %v98, %v103
    %v108 = vrsqrt.pop %v77
    %v109 = vmul.f32 %v108, %v77
    %v110 = vmul.f32 %v109, %v108
    %v111 = vmul.f32 0.5, %v110
    %v112 = vsub.f32 1.5, %v111
    %v113 = vmul.f32 %v108, %v112
    %vm114 = vweird.f32 %v77
    %vm115 = vweird.f32 %v108
    %vm116 = vmor %vm114, %vm115
    %v117 = vsel %vm116, %v108, %v113
    %v118 = vmul.f32 %v42, %v87
    %v119 = vmul.f32 %v43, %v97
    %v120 = vmul.f32 %v44, %v107
    %v121 = vmul.f32 %v45, %v117
    %v122 = vld [vmem:[#allocation5] sm:$0x1]
    %v124 = vperm.slane %v122, 0
    %v126 = vmul.f32 %v118, %v124
    %v127 = vmul.f32 %v119, %v124
    %v128 = vmul.f32 %v120, %v124
    %v129 = vmul.f32 %v121, %v124
    %130 = vst.msk [vmem:[#allocation7] sm:$0xff] %vm50, %v126
    %131 = vst.msk [vmem:[#allocation7 + $0x8] sm:$0xff] %vm50, %v127
    %132 = vst.msk [vmem:[#allocation7 + $0x10] sm:$0xff] %vm50, %v128
    %133 = vst.msk [vmem:[#allocation7 + $0x18] sm:$0xff] %vm50, %v129
    // Predicated region
    $region18: #{tpu_custom_call.1} parent=1 // pred_check
      _
    $region19: #{tpu_custom_call.1} parent=1 // pred_check_branch
      %135 = sbr.rel (0) target = $region21
    $region20: #{tpu_custom_call.1} parent=1 // pred_region
      %137 = vsyncadd [#allocation4], 256
      %s138 = sshll.u32 [#allocation7], 4
      %s139 = int_to_ptr.vmem [resolvable:$true] %s138
      %s140 = sshll.u32 %s2, 4
      %s141 = int_to_ptr.hbm [resolvable:$true] %s140
      %146 = dma.vmem_to_hbm [thread:$0]  %s139, 256, %s141, [#allocation4], 128, 128, 8
    $region21: #{tpu_custom_call.1} parent=1 // pred_fallthru
      _
    // Predicated region
    $region22: #{tpu_custom_call.1} parent=1 // pred_check
      _
    $region23: #{tpu_custom_call.1} parent=1 // pred_check_branch
      %148 = sbr.rel (0) target = $region25
    $region24: #{tpu_custom_call.1} parent=1 // pred_region
      %150 = dma.done [#allocation4], 512
    $region25: #{tpu_custom_call.1} parent=1 // pred_fallthru
      _
    %151 = vsyncpa [#allocation3], 1
    %152 = vsyncpa [#allocation6], 1
    %153 = vsyncpa [#allocation4], 1

</llo_original>
